<compile_context>
chip_gen: v5e
topology: v5e:2x2
jax: 0.10.0
libtpu: 0.0.40
codegen_flags: <defaults>
</compile_context>

<pallas_src>
import functools

import jax
import jax.numpy as jnp
from jax.experimental import pallas as pl
from jax.experimental.pallas import tpu as pltpu


# ----------------------------- Pallas kernel -------------------------------

def _featured_actor_kernel(goal_ref, state_ref, w_ref, b_ref, o_ref, *,
                           goal_f, goal_rows, action_size, n_layers):
    """Fused noisy-MLP + DDPG(tanh) head.

    goal_ref : (bm, goal_f)
    state_ref: (bm, hist_f)           -- full history; slice is baked into w[0]
    w_ref    : (L, R, Cout)           -- packed effective weights (zero-padded)
    b_ref    : (L, 1, Cout)           -- packed effective biases  (zero-padded)
    o_ref    : (bm, action_size)
    """
    f32 = jnp.float32
    wdt = w_ref.dtype
    hist_f = state_ref.shape[-1]
    c_out = w_ref.shape[-1]

    goal = goal_ref[...].astype(wdt)
    state = state_ref[...].astype(wdt)

    # Layer 0: the [goal, state[:, -state_size:]] concat is two MXU dots against
    # disjoint (zero-padded) row blocks of the packed weight.
    w0 = w_ref[0]                                                   # (R, Cout)
    h = (jnp.dot(goal, w0[:goal_f, :], preferred_element_type=f32)
         + jnp.dot(state, w0[goal_rows:goal_rows + hist_f, :],
                   preferred_element_type=f32)
         + b_ref[0].astype(f32))

    # Hidden / output layers (ReLU between, none after the last).
    for l in range(1, n_layers):
        h = jnp.maximum(h, 0.0)
        h = (jnp.dot(h.astype(wdt), w_ref[l][:c_out, :],
                     preferred_element_type=f32)
             + b_ref[l].astype(f32))

    # DDPG head: wrap_action assumed to be a tanh squash.
    # Padded columns of h are exactly zero; only the real action lanes are kept.
    o_ref[...] = jnp.tanh(h[:, :action_size]).astype(o_ref.dtype)


# --------------------------- packing / wrapper ------------------------------

def _round_up(x, m):
    return ((x + m - 1) // m) * m


def _pick_batch_tile(batch):
    # Large deployments: tile the batch so blocks pipeline (and shard across
    # v7x's 2 TensorCores via "parallel" semantics). Tiny batches = one block.
    for bm in (512, 256, 128):
        if batch % bm == 0:
            return bm
    return batch


def _pack_effective_params(params, noise, goal_f, state_size, hist_f,
                           param_dtype):
    """Fold mu/sigma/noise into effective weights and pack all layers into two
    slabs (one weight DMA + one bias DMA for the whole net).

    Layer-0 rows are laid out so the kernel consumes the raw `goal` and *full*
    `state`: rows [0, goal_f) hold the goal part of the concat, rows
    [G + hist_f - state_size, G + hist_f) hold the state[:, -state_size:] part,
    everything else is zero (implements slice + concat "for free" in the dot).
    """
    n_layers = len(params)
    fan_outs = [p["b_mu"].shape[-1] for p in params]
    c_out = max(fan_outs)
    g_rows = _round_up(goal_f, 8)
    r = _round_up(max(g_rows + hist_f, c_out), 8)

    w_slab = jnp.zeros((n_layers, r, c_out), jnp.float32)
    b_slab = jnp.zeros((n_layers, 1, c_out), jnp.float32)
    for l, (p, n) in enumerate(zip(params, noise)):
        eps_w = jnp.outer(n["eps_in"], n["eps_out"])                # (in, out)
        w_eff = p["w_mu"] + p["w_sigma"] * eps_w                    # (in, out)
        b_eff = p["b_mu"] + p["b_sigma"] * n["eps_out"][None, :]    # (1, out)
        fan_in, fan_out = w_eff.shape
        if l == 0:
            w_slab = w_slab.at[0, :goal_f, :fan_out].set(w_eff[:goal_f])
            s0 = g_rows + hist_f - state_size
            w_slab = w_slab.at[0, s0:s0 + state_size, :fan_out].set(
                w_eff[goal_f:])
        else:
            w_slab = w_slab.at[l, :fan_in, :fan_out].set(w_eff)
        b_slab = b_slab.at[l, :, :fan_out].set(b_eff)
    return w_slab.astype(param_dtype), b_slab, g_rows, r, c_out


@functools.partial(jax.jit, static_argnames=("state_size", "param_dtype"))
def featured_actor_forward(goal, state, params, noise, *, state_size,
                           param_dtype=jnp.float32):
    """FeaturedActor.forward: pack noisy params (fused by XLA) + one Pallas call."""
    if goal.ndim != state.ndim:
        # TODO(synk): no-concat path (goal.dim() != state.dim()) not implemented.
        raise NotImplementedError("goal.ndim must equal state.ndim")

    batch, hist_f = state.shape
    goal_f = goal.shape[-1]
    action_size = params[-1]["b_mu"].shape[-1]
    n_layers = len(params)

    w_slab, b_slab, g_rows, r, c_out = _pack_effective_params(
        params, noise, goal_f, state_size, hist_f, param_dtype)

    bm = _pick_batch_tile(batch)
    grid = (batch // bm,)

    kernel = functools.partial(
        _featured_actor_kernel, goal_f=goal_f, goal_rows=g_rows,
        action_size=action_size, n_layers=n_layers)

    return pl.pallas_call(
        kernel,
        out_shape=jax.ShapeDtypeStruct((batch, action_size), jnp.float32),
        grid=grid,
        in_specs=[
            pl.BlockSpec((bm, goal_f), lambda i: (i, 0)),
            pl.BlockSpec((bm, hist_f), lambda i: (i, 0)),
            pl.BlockSpec((n_layers, r, c_out), lambda i: (0, 0, 0)),   # resident
            pl.BlockSpec((n_layers, 1, c_out), lambda i: (0, 0, 0)),   # resident
        ],
        out_specs=pl.BlockSpec((bm, action_size), lambda i: (i, 0)),
        compiler_params=pltpu.CompilerParams(
            dimension_semantics=("parallel",)),   # shards batch tiles on v7x's 2 TCs
    )(goal, state, w_slab, b_slab)


# ------------------------ parameter / noise construction --------------------

def init_noisy_net(key, sizes, sigma0=0.5):
    """Standard NoisyLinear init: mu ~ U(+-1/sqrt(fan_in)), sigma = sigma0/sqrt(fan_in).

    Weights stored transposed as (in, out); biases as (1, out)."""
    params = []
    for fan_in, fan_out in zip(sizes[:-1], sizes[1:]):
        key, k1, k2 = jax.random.split(key, 3)
        bound = 1.0 / jnp.sqrt(jnp.float32(fan_in))
        params.append({
            "w_mu": jax.random.uniform(k1, (fan_in, fan_out), jnp.float32,
                                       -bound, bound),
            "w_sigma": jnp.full((fan_in, fan_out), sigma0 / float(fan_in) ** 0.5,
                                jnp.float32),
            "b_mu": jax.random.uniform(k2, (1, fan_out), jnp.float32,
                                       -bound, bound),
            "b_sigma": jnp.full((1, fan_out), sigma0 / float(fan_in) ** 0.5,
                                jnp.float32),
        })
    return params


def sample_noise(key, sizes):
    """Factorized Gaussian noise (FeaturedActor.sample_noise equivalent).

    Kept factorized (eps_in, eps_out) — the rank-1 outer product is formed only
    inside the jitted packing step, never materialized as a separate HBM input."""
    def f(x):
        return jnp.sign(x) * jnp.sqrt(jnp.abs(x))

    noise = []
    for fan_in, fan_out in zip(sizes[:-1], sizes[1:]):
        key, ki, ko = jax.random.split(key, 3)
        noise.append({
            "eps_in": f(jax.random.normal(ki, (fan_in,), jnp.float32)),
            "eps_out": f(jax.random.normal(ko, (fan_out,), jnp.float32)),
        })
    return noise


# ----------------------------- reference (pure JAX) --------------------------

def _reference_forward(goal, state, params, noise, state_size):
    state = state[:, -state_size:]
    if goal.ndim == state.ndim:
        state = jnp.concatenate([goal, state], axis=-1)
    h = state
    n_layers = len(params)
    for i, (p, n) in enumerate(zip(params, noise)):
        w = p["w_mu"] + p["w_sigma"] * jnp.outer(n["eps_in"], n["eps_out"])
        b = p["b_mu"] + p["b_sigma"] * n["eps_out"][None, :]
        h = h @ w + b
        if i < n_layers - 1:
            h = jnp.maximum(h, 0.0)
    return jnp.tanh(h)


# --------------------------------- main --------------------------------------

if __name__ == "__main__":
    # cfg consistent with FeaturedActor.__init__
    cfg = {
        "full_rnn_out": False,
        "history_features": 64,
        "rnn_n_layers": 2,
        "her_state_features": 8,
        "ddpg": True,
    }
    action_size = 4
    hiddens = [32, 32]
    batch = 4

    state_size = cfg["history_features"] // cfg["rnn_n_layers"] // 2   # 16
    net_sizes = [state_size + cfg["her_state_features"]] + hiddens + [action_size]

    key = jax.random.PRNGKey(0)
    k_goal, k_state, k_param, k_noise = jax.random.split(key, 4)

    goal = jax.random.normal(k_goal, (batch, cfg["her_state_features"]), jnp.float32)
    state = jax.random.normal(k_state, (batch, cfg["history_features"]), jnp.float32)

    params = init_noisy_net(k_param, net_sizes)
    noise = sample_noise(k_noise, net_sizes)

    out = featured_actor_forward(goal, state, params, noise,
                                 state_size=state_size)
    out = jax.block_until_ready(out)

    ref = _reference_forward(goal, state, params, noise, state_size)
    assert out.shape == (batch, action_size)
    assert jnp.allclose(out, ref, atol=1e-4, rtol=1e-4), "mismatch vs. JAX reference"

    print("KERNEL_OK")
</pallas_src>

<mosaic_0001>
module attributes {stable_mosaic.version = 11 : i64} {
  func.func @_featured_actor_kernel(%arg0: i32, %arg1: memref<4x8xf32, #tpu.memory_space<vmem>>, %arg2: memref<4x64xf32, #tpu.memory_space<vmem>>, %arg3: memref<3x72x32xf32, #tpu.memory_space<vmem>>, %arg4: memref<3x1x32xf32, #tpu.memory_space<vmem>>, %arg5: memref<4x4xf32, #tpu.memory_space<vmem>>) attributes {dimension_semantics = [#tpu.dimension_semantics<parallel>], iteration_bounds = array<i64: 1>, scalar_prefetch = 0 : i64, scratch_operands = 0 : i64, tpu.core_type = #tpu.core_type<tc>, window_params = [{transform_indices = @transform_0, window_bounds = array<i64: 4, 8>}, {transform_indices = @transform_1, window_bounds = array<i64: 4, 64>}, {pipeline_mode = #tpu.pipeline_mode<synchronous>, transform_indices = @transform_2, window_bounds = array<i64: 3, 72, 32>}, {pipeline_mode = #tpu.pipeline_mode<synchronous>, transform_indices = @transform_3, window_bounds = array<i64: 3, 1, 32>}, {transform_indices = @transform_4, window_bounds = array<i64: 4, 4>}]} {
    %c0 = arith.constant 0 : index
    %c0_0 = arith.constant 0 : index
    %0 = vector.load %arg1[%c0, %c0_0] : memref<4x8xf32, #tpu.memory_space<vmem>>, vector<4x8xf32>
    %c0_1 = arith.constant 0 : index
    %c0_2 = arith.constant 0 : index
    %1 = vector.load %arg2[%c0_1, %c0_2] : memref<4x64xf32, #tpu.memory_space<vmem>>, vector<4x64xf32>
    %c0_3 = arith.constant 0 : index
    %c0_4 = arith.constant 0 : index
    %c0_5 = arith.constant 0 : index
    %2 = vector.load %arg3[%c0_3, %c0_4, %c0_5] : memref<3x72x32xf32, #tpu.memory_space<vmem>>, vector<1x72x32xf32>
    %3 = vector.shape_cast %2 : vector<1x72x32xf32> to vector<72x32xf32>
    %4 = vector.extract_strided_slice %3 {offsets = [0, 0], sizes = [8, 32], strides = [1, 1]} : vector<72x32xf32> to vector<8x32xf32>
    %cst = arith.constant dense<0.000000e+00> : vector<4x32xf32>
    %5 = tpu.matmul %0, %4, %cst {dimension_numbers = #tpu.dot_dimension_numbers<[1], [0], [0], [1], [0, 0, 1, 1], [], []>} : vector<4x8xf32>, vector<8x32xf32>, vector<4x32xf32> -> vector<4x32xf32>
    %6 = vector.extract_strided_slice %3 {offsets = [8, 0], sizes = [64, 32], strides = [1, 1]} : vector<72x32xf32> to vector<64x32xf32>
    %cst_6 = arith.constant dense<0.000000e+00> : vector<4x32xf32>
    %7 = tpu.matmul %1, %6, %cst_6 {dimension_numbers = #tpu.dot_dimension_numbers<[1], [0], [0], [1], [0, 0, 1, 1], [], []>} : vector<4x64xf32>, vector<64x32xf32>, vector<4x32xf32> -> vector<4x32xf32>
    %8 = arith.addf %5, %7 : vector<4x32xf32>
    %c0_7 = arith.constant 0 : index
    %c0_8 = arith.constant 0 : index
    %c0_9 = arith.constant 0 : index
    %9 = vector.load %arg4[%c0_7, %c0_8, %c0_9] : memref<3x1x32xf32, #tpu.memory_space<vmem>>, vector<1x1x32xf32>
    %10 = vector.shape_cast %9 : vector<1x1x32xf32> to vector<1x32xf32>
    %11 = vector.broadcast %10 : vector<1x32xf32> to vector<4x32xf32>
    %12 = arith.addf %8, %11 : vector<4x32xf32>
    %cst_10 = arith.constant 0.000000e+00 : f32
    %13 = vector.broadcast %cst_10 : f32 to vector<4x32xf32>
    %14 = arith.maximumf %12, %13 : vector<4x32xf32>
    %c1 = arith.constant 1 : index
    %c0_11 = arith.constant 0 : index
    %c0_12 = arith.constant 0 : index
    %15 = vector.load %arg3[%c1, %c0_11, %c0_12] : memref<3x72x32xf32, #tpu.memory_space<vmem>>, vector<1x72x32xf32>
    %16 = vector.shape_cast %15 : vector<1x72x32xf32> to vector<72x32xf32>
    %17 = vector.extract_strided_slice %16 {offsets = [0, 0], sizes = [32, 32], strides = [1, 1]} : vector<72x32xf32> to vector<32x32xf32>
    %cst_13 = arith.constant dense<0.000000e+00> : vector<4x32xf32>
    %18 = tpu.matmul %14, %17, %cst_13 {dimension_numbers = #tpu.dot_dimension_numbers<[1], [0], [0], [1], [0, 0, 1, 1], [], []>} : vector<4x32xf32>, vector<32x32xf32>, vector<4x32xf32> -> vector<4x32xf32>
    %c1_14 = arith.constant 1 : index
    %c0_15 = arith.constant 0 : index
    %c0_16 = arith.constant 0 : index
    %19 = vector.load %arg4[%c1_14, %c0_15, %c0_16] : memref<3x1x32xf32, #tpu.memory_space<vmem>>, vector<1x1x32xf32>
    %20 = vector.shape_cast %19 : vector<1x1x32xf32> to vector<1x32xf32>
    %21 = vector.broadcast %20 : vector<1x32xf32> to vector<4x32xf32>
    %22 = arith.addf %18, %21 : vector<4x32xf32>
    %cst_17 = arith.constant 0.000000e+00 : f32
    %23 = vector.broadcast %cst_17 : f32 to vector<4x32xf32>
    %24 = arith.maximumf %22, %23 : vector<4x32xf32>
    %c2 = arith.constant 2 : index
    %c0_18 = arith.constant 0 : index
    %c0_19 = arith.constant 0 : index
    %25 = vector.load %arg3[%c2, %c0_18, %c0_19] : memref<3x72x32xf32, #tpu.memory_space<vmem>>, vector<1x72x32xf32>
    %26 = vector.shape_cast %25 : vector<1x72x32xf32> to vector<72x32xf32>
    %27 = vector.extract_strided_slice %26 {offsets = [0, 0], sizes = [32, 32], strides = [1, 1]} : vector<72x32xf32> to vector<32x32xf32>
    %cst_20 = arith.constant dense<0.000000e+00> : vector<4x32xf32>
    %28 = tpu.matmul %24, %27, %cst_20 {dimension_numbers = #tpu.dot_dimension_numbers<[1], [0], [0], [1], [0, 0, 1, 1], [], []>} : vector<4x32xf32>, vector<32x32xf32>, vector<4x32xf32> -> vector<4x32xf32>
    %c2_21 = arith.constant 2 : index
    %c0_22 = arith.constant 0 : index
    %c0_23 = arith.constant 0 : index
    %29 = vector.load %arg4[%c2_21, %c0_22, %c0_23] : memref<3x1x32xf32, #tpu.memory_space<vmem>>, vector<1x1x32xf32>
    %30 = vector.shape_cast %29 : vector<1x1x32xf32> to vector<1x32xf32>
    %31 = vector.broadcast %30 : vector<1x32xf32> to vector<4x32xf32>
    %32 = arith.addf %28, %31 : vector<4x32xf32>
    %33 = vector.extract_strided_slice %32 {offsets = [0, 0], sizes = [4, 4], strides = [1, 1]} : vector<4x32xf32> to vector<4x4xf32>
    %34 = math.tanh %33 : vector<4x4xf32>
    %c0_24 = arith.constant 0 : index
    %c0_25 = arith.constant 0 : index
    %35 = vector.load %arg5[%c0_24, %c0_25] : memref<4x4xf32, #tpu.memory_space<vmem>>, vector<4x4xf32>
    tpu.vector_store %arg5[%c0_24, %c0_25], %34 {strides = array<i32>} : memref<4x4xf32, #tpu.memory_space<vmem>>, vector<4x4xf32>,
    return
  }
  func.func @transform_0(%arg0: i32) -> (i32, i32) {
    %c0_i32 = arith.constant 0 : i32
    %c0_i32_0 = arith.constant 0 : i32
    return %arg0, %c0_i32 : i32, i32
  }
  func.func @transform_1(%arg0: i32) -> (i32, i32) {
    %c0_i32 = arith.constant 0 : i32
    %c0_i32_0 = arith.constant 0 : i32
    return %arg0, %c0_i32 : i32, i32
  }
  func.func @transform_2(%arg0: i32) -> (i32, i32, i32) {
    %c0_i32 = arith.constant 0 : i32
    %c0_i32_0 = arith.constant 0 : i32
    %c0_i32_1 = arith.constant 0 : i32
    %c0_i32_2 = arith.constant 0 : i32
    return %c0_i32, %c0_i32_0, %c0_i32_1 : i32, i32, i32
  }
  func.func @transform_3(%arg0: i32) -> (i32, i32, i32) {
    %c0_i32 = arith.constant 0 : i32
    %c0_i32_0 = arith.constant 0 : i32
    %c0_i32_1 = arith.constant 0 : i32
    %c0_i32_2 = arith.constant 0 : i32
    return %c0_i32, %c0_i32_0, %c0_i32_1 : i32, i32, i32
  }
  func.func @transform_4(%arg0: i32) -> (i32, i32) {
    %c0_i32 = arith.constant 0 : i32
    %c0_i32_0 = arith.constant 0 : i32
    return %arg0, %c0_i32 : i32, i32
  }
}

</mosaic_0001>

<llo_original>
// kernel: featured_actor_forward.1
$region0: #{featured_actor_forward.1}
  #allocation0 [shape = 'u32[]', space=smem, size = 0x4, offset = 0x4, fixed_abs, tag = 'smem constant byte address 0x4 - core index']
  #allocation1 [shape = 'u32[72,128]{1,0:T(1,128)}', space=vmem, size = 0x9000, scoped, tag = 'internal scratch']
  %s0 = inlined_call_operand.vmem [shape: f32[4,8], index: 0, kind: input, shape index: {}]
  %s1 = inlined_call_operand.vmem [shape: f32[4,64], index: 1, kind: input, shape index: {}]
  %s2 = inlined_call_operand.vmem [shape: f32[3,72,32], index: 2, kind: input, shape index: {}]
  %s3 = inlined_call_operand.vmem [shape: f32[3,1,32], index: 3, kind: input, shape index: {}]
  %s4 = inlined_call_operand.hbm [shape: f32[4,4], index: 4, kind: output, shape index: {}]
  %s5 = sld [smem:[#allocation0]]
  $region26: #{featured_actor_forward.1} parent=0
    _
  %s7 = ssub.s32 1, %s5
  %s8 = scalar_select 0, %s7, %s5
  $region1: #{featured_actor_forward.1} parent=0
    #allocation2 [shape = 'u8[2048]{0}', space=vmem, size = 0x800, scoped, tag = 'output window, operand 0, single buffered']
    #allocation3 [shape = 's32[1]{0}', space=sflag, size = 0x4, scoped, tag = 'scoped memory for featured_actor_forward.1']
    %9 = vsyncpa [#allocation3], 0
    // Predicated region
    $region2: #{featured_actor_forward.1} parent=1 // pred_check
      _
    $region3: #{featured_actor_forward.1} parent=1 // pred_check_branch
      %11 = sbr.rel (0) target = $region5
    $region4: #{featured_actor_forward.1} parent=1 // pred_region
      _
    $region5: #{featured_actor_forward.1} parent=1 // pred_fallthru
      _
    // Predicated region
    $region6: #{featured_actor_forward.1} parent=1 // pred_check
      _
    $region7: #{featured_actor_forward.1} parent=1 // pred_check_branch
      %13 = sbr.rel (0) target = $region9
    $region8: #{featured_actor_forward.1} parent=1 // pred_region
      _
    $region9: #{featured_actor_forward.1} parent=1 // pred_fallthru
      _
    // Predicated region
    $region10: #{featured_actor_forward.1} parent=1 // pred_check
      _
    $region11: #{featured_actor_forward.1} parent=1 // pred_check_branch
      %15 = sbr.rel (0) target = $region13
    $region12: #{featured_actor_forward.1} parent=1 // pred_region
      _
    $region13: #{featured_actor_forward.1} parent=1 // pred_fallthru
      _
    // Predicated region
    $region14: #{featured_actor_forward.1} parent=1 // pred_check
      _
    $region15: #{featured_actor_forward.1} parent=1 // pred_check_branch
      %17 = sbr.rel (0) target = $region17
    $region16: #{featured_actor_forward.1} parent=1 // pred_region
      _
    $region17: #{featured_actor_forward.1} parent=1 // pred_fallthru
      _
    %v18 = vld [vmem:[%s0] sm:$0xf]
    %v19 = vld [vmem:[%s1] sm:$0xf]
    %v20 = vld [vmem:[%s2] sm:$0xff]
    %v21 = vld [vmem:[%s2 + $0x8] sm:$0xff]
    %v22 = vld [vmem:[%s2 + $0x10] sm:$0xff]
    %v23 = vld [vmem:[%s2 + $0x18] sm:$0xff]
    %v24 = vld [vmem:[%s2 + $0x20] sm:$0xff]
    %v25 = vld [vmem:[%s2 + $0x28] sm:$0xff]
    %v26 = vld [vmem:[%s2 + $0x30] sm:$0xff]
    %v27 = vld [vmem:[%s2 + $0x38] sm:$0xff]
    %v28 = vld [vmem:[%s2 + $0x40] sm:$0xff]
    %vm29 = vcmask 523264
    %v31 = vsel %vm29, %v19, 0
    %33 = vmatpush.msra.mxu0 0.0
    %34 = vmatpush.msra.mxu0 0.0
    %35 = vmatpush.msra.mxu0 0.0
    %36 = vmatpush.msra.mxu0 0.0
    %37 = vmatpush.msra.mxu0 0.0
    %38 = vmatpush.msra.mxu0 0.0
    %39 = vmatpush.msra.mxu0 0.0
    %40 = vmatpush.msra.mxu0 0.0
    %41 = vmatpush.msra.mxu0 %v28
    %42 = vmatpush.msra.mxu0 %v27
    %43 = vmatpush.msra.mxu0 %v26
    %44 = vmatpush.msra.mxu0 %v25
    %45 = vmatpush.msra.mxu0 %v24
    %46 = vmatpush.msra.mxu0 %v23
    %47 = vmatpush.msra.mxu0 %v22
    %48 = vmatpush.msra.mxu0 %v21
    %49 = vmatmul.f32.gmra.mxu0 %v31
    %v50 = vpop.f32.mrf.mxu0
    %v51 = vadd.f32 0.0, %v50
    %52 = vdwg.mxu0
    %vm53 = vcmask 64512
    %v55 = vsel %vm53, %v18, 0
    %57 = vmatpush.msra.mxu0 0.0
    %58 = vmatpush.msra.mxu0 0.0
    %59 = vmatpush.msra.mxu0 0.0
    %60 = vmatpush.msra.mxu0 0.0
    %61 = vmatpush.msra.mxu0 0.0
    %62 = vmatpush.msra.mxu0 0.0
    %63 = vmatpush.msra.mxu0 0.0
    %64 = vmatpush.msra.mxu0 0.0
    %65 = vmatpush.msra.mxu0 0.0
    %66 = vmatpush.msra.mxu0 0.0
    %67 = vmatpush.msra.mxu0 0.0
    %68 = vmatpush.msra.mxu0 0.0
    %69 = vmatpush.msra.mxu0 0.0
    %70 = vmatpush.msra.mxu0 0.0
    %71 = vmatpush.msra.mxu0 0.0
    %72 = vmatpush.msra.mxu0 %v20
    %73 = vmatmul.f32.gmra.mxu0 %v55
    %v74 = vpop.f32.mrf.mxu0
    %v75 = vadd.f32 %v51, %v74
    %76 = vdwg.mxu0
    %v77 = vld [vmem:[%s3] sm:$0x1]
    %v79 = vperm.slane %v77, 0
    %v81 = vadd.f32 %v75, %v79
    %v82 = vmax.f32 %v81, 0.0
    %s83 = scalar_lea.vmem %s2, 72
    %v84 = vld [vmem:[%s83] sm:$0xff]
    %v85 = vld [vmem:[%s83 + $0x8] sm:$0xff]
    %v86 = vld [vmem:[%s83 + $0x10] sm:$0xff]
    %v87 = vld [vmem:[%s83 + $0x18] sm:$0xff]
    %s88 = scalar_lea.vmem %s3, 1
    %v89 = vld [vmem:[%s88] sm:$0x1]
    %v91 = vperm.slane %v89, 0
    %vm93 = vcmask 261120
    %v95 = vsel %vm93, %v82, 0
    %97 = vmatpush.msra.mxu0 0.0
    %98 = vmatpush.msra.mxu0 0.0
    %99 = vmatpush.msra.mxu0 0.0
    %100 = vmatpush.msra.mxu0 0.0
    %101 = vmatpush.msra.mxu0 0.0
    %102 = vmatpush.msra.mxu0 0.0
    %103 = vmatpush.msra.mxu0 0.0
    %104 = vmatpush.msra.mxu0 0.0
    %105 = vmatpush.msra.mxu0 0.0
    %106 = vmatpush.msra.mxu0 0.0
    %107 = vmatpush.msra.mxu0 0.0
    %108 = vmatpush.msra.mxu0 0.0
    %109 = vmatpush.msra.mxu0 %v87
    %110 = vmatpush.msra.mxu0 %v86
    %111 = vmatpush.msra.mxu0 %v85
    %112 = vmatpush.msra.mxu0 %v84
    %113 = vmatmul.f32.gmra.mxu0 %v95
    %v114 = vpop.f32.mrf.mxu0
    %v115 = vadd.f32 %v91, %v114
    %116 = vdwg.mxu0
    %v117 = vmax.f32 %v115, 0.0
    %s118 = scalar_lea.vmem %s2, 144
    %v119 = vld [vmem:[%s118] sm:$0xff]
    %v120 = vld [vmem:[%s118 + $0x8] sm:$0xff]
    %v121 = vld [vmem:[%s118 + $0x10] sm:$0xff]
    %v122 = vld [vmem:[%s118 + $0x18] sm:$0xff]
    %s123 = scalar_lea.vmem %s3, 2
    %v124 = vld [vmem:[%s123] sm:$0x1]
    %v126 = vperm.slane %v124, 0
    %v129 = vsel %vm93, %v117, 0
    %131 = vmatpush.msra.mxu0 0.0
    %132 = vmatpush.msra.mxu0 0.0
    %133 = vmatpush.msra.mxu0 0.0
    %134 = vmatpush.msra.mxu0 0.0
    %135 = vmatpush.msra.mxu0 0.0
    %136 = vmatpush.msra.mxu0 0.0
    %137 = vmatpush.msra.mxu0 0.0
    %138 = vmatpush.msra.mxu0 0.0
    %139 = vmatpush.msra.mxu0 0.0
    %140 = vmatpush.msra.mxu0 0.0
    %141 = vmatpush.msra.mxu0 0.0
    %142 = vmatpush.msra.mxu0 0.0
    %143 = vmatpush.msra.mxu0 %v122
    %144 = vmatpush.msra.mxu0 %v121
    %145 = vmatpush.msra.mxu0 %v120
    %146 = vmatpush.msra.mxu0 %v119
    %147 = vmatmul.f32.gmra.mxu0 %v129
    %v148 = vpop.f32.mrf.mxu0
    %v149 = vadd.f32 %v126, %v148
    %150 = vdwg.mxu0
    %v151 = vtanh.pop %v149
    %vm152 = vcmask 27648
    %153 = vst.msk [vmem:[#allocation2] sm:$0xf] %vm152, %v151
    // Predicated region
    $region18: #{featured_actor_forward.1} parent=1 // pred_check
      _
    $region19: #{featured_actor_forward.1} parent=1 // pred_check_branch
      %155 = sbr.rel (0) target = $region21
    $region20: #{featured_actor_forward.1} parent=1 // pred_region
      %157 = vsyncadd [#allocation3], 0
      %s159 = sshll.u32 [#allocation2], 4
      %s160 = int_to_ptr.vmem [resolvable:$true] %s159
      %s161 = sshll.u32 %s4, 4
      %s162 = int_to_ptr.hbm [resolvable:$true] %s161
      %164 = dma.vmem_to_hbm [thread:$0]  %s160, 64, %s162, [#allocation3]
    $region21: #{featured_actor_forward.1} parent=1 // pred_fallthru
      _
    // Predicated region
    $region22: #{featured_actor_forward.1} parent=1 // pred_check
      _
    $region23: #{featured_actor_forward.1} parent=1 // pred_check_branch
      %166 = sbr.rel (0) target = $region25
    $region24: #{featured_actor_forward.1} parent=1 // pred_region
      %168 = dma.done [#allocation3], 64
    $region25: #{featured_actor_forward.1} parent=1 // pred_fallthru
      _
    %169 = vsyncpa [#allocation3], 1

</llo_original>
